<compile_context>
chip_gen: v7x
topology: tpu7x:2x2x1
jax: 0.10.0
libtpu: 0.0.40
codegen_flags: <defaults>
</compile_context>

<pallas_src>
import jax
import jax.numpy as jnp
from jax import lax
from jax.experimental import pallas as pl
from jax.experimental.pallas import tpu as pltpu


def _mul_conv1x1_kernel(x_ref, s_ref, w_ref, o_ref):
    # x_ref: (HW, Cin) f32, s_ref: (1, Cin) f32, w_ref: (tn, Cin) bf16.
    # f32 elementwise scale on the VPU (free filler under the weight DMA),
    # bf16 trans-B matmul on the MXU with f32 accumulation.
    xs = (x_ref[...] * s_ref[...]).astype(jnp.bfloat16)     # broadcast over rows
    o_ref[...] = lax.dot_general(
        xs,
        w_ref[...],
        dimension_numbers=(((1,), (1,)), ((), ())),          # contract Cin with Cin
        preferred_element_type=jnp.float32,
    ).astype(o_ref.dtype)


def _pick_tn(cin, cout):
    """Choose the Cout block size.

    Single block (tn == Cout) whenever the bf16 weight is small enough to sit in
    VMEM double-buffered (true for the real 2304x384 shape) or Cout is not a
    multiple of 128 (keeps the output store lane-dense).  Otherwise split into
    128-wide blocks.
    """
    weight_bytes = cin * cout * 2  # bf16
    if weight_bytes <= 4 * 1024 * 1024 or cout % 128 != 0:
        return cout
    return 128


def mul_conv1x1(x_nchw, scale_nc11, weight_oihw, *, tn=None):
    """Computes conv2d_1x1(x * scale), no bias. NCHW in / NCHW out."""
    N, Cin, H, W = x_nchw.shape
    Cout = weight_oihw.shape[0]
    HW = H * W

    if tn is None:
        tn = _pick_tn(Cin, Cout)
    if Cout % tn != 0:
        tn = Cout  # keep the output block lane-dense / full-extent

    # Glue (fusible into the pallas_call inputs): NHWC GEMM view of x, flattened
    # scale, and the weight in its NATIVE (Cout, Cin) layout cast to bf16.
    x3d = jnp.transpose(x_nchw, (0, 2, 3, 1)).reshape(N, HW, Cin)      # f32
    s3d = scale_nc11.reshape(N, 1, Cin)                                # f32, per-sample
    w2d = weight_oihw.reshape(Cout, Cin).astype(jnp.bfloat16)          # no transpose

    flops = 2 * N * HW * Cin * Cout
    bytes_accessed = (
        N * HW * Cin * 4        # x (f32)
        + N * Cin * 4           # scale (f32)
        + Cin * Cout * 2        # weight (bf16)
        + N * HW * Cout * 4     # output (f32)
    )

    out3d = pl.pallas_call(
        _mul_conv1x1_kernel,
        out_shape=jax.ShapeDtypeStruct((N, HW, Cout), x_nchw.dtype),
        grid=(N, Cout // tn),
        in_specs=[
            pl.BlockSpec((None, HW, Cin), lambda b, j: (b, 0, 0)),   # x tile (per sample)
            pl.BlockSpec((None, 1, Cin), lambda b, j: (b, 0, 0)),    # per-sample scale
            pl.BlockSpec((tn, Cin), lambda b, j: (j, 0)),            # weight Cout-slice, native layout
        ],
        out_specs=pl.BlockSpec((None, HW, tn), lambda b, j: (b, 0, j)),
        compiler_params=pltpu.CompilerParams(
            dimension_semantics=("parallel", "parallel"),
            allow_input_fusion=[True, True, True],
        ),
        cost_estimate=pl.CostEstimate(
            flops=flops, transcendentals=0, bytes_accessed=bytes_accessed
        ),
    )(x3d, s3d, w2d)

    # Back to NCHW (module semantics).
    # TODO(synk): if the downstream consumer accepts NHWC, skip this transpose.
    return jnp.transpose(out3d.reshape(N, H, W, Cout), (0, 3, 1, 2))


if __name__ == "__main__":
    # Small shapes consistent with the module's forward:
    # original: x373 [1, 2304, 7, 7], x378 [1, 2304, 1, 1], Conv2d(2304 -> 384, 1x1)
    # scaled-down: batch 2 (exercises per-sample scale), Cin=256, Cout=128, spatial 7x7.
    N, Cin, Cout, H, W = 2, 256, 128, 7, 7

    key = jax.random.PRNGKey(0)
    kx, ks, kw = jax.random.split(key, 3)
    x373 = jax.random.normal(kx, (N, Cin, H, W), dtype=jnp.float32)
    x378 = jax.random.normal(ks, (N, Cin, 1, 1), dtype=jnp.float32)
    weight = jax.random.normal(kw, (Cout, Cin, 1, 1), dtype=jnp.float32) * 0.02

    out = mul_conv1x1(x373, x378, weight)
    out = jax.block_until_ready(out)
    assert out.shape == (N, Cout, H, W), out.shape

    # Reference 1: same numeric path (f32 multiply, bf16 MXU inputs, f32 acc) in pure JAX.
    xb = (x373 * x378).astype(jnp.bfloat16)
    ref_bf16 = jnp.einsum(
        "nchw,oc->nohw",
        xb,
        weight.reshape(Cout, Cin).astype(jnp.bfloat16),
        preferred_element_type=jnp.float32,
    )
    assert jnp.allclose(out, ref_bf16, atol=1e-2, rtol=1e-2), "mismatch vs bf16 reference"

    # Reference 2: full-f32 reference, loose tolerance to allow bf16 rounding in the matmul.
    ref_f32 = jnp.einsum("nchw,oc->nohw", x373 * x378, weight.reshape(Cout, Cin))
    assert jnp.allclose(out, ref_f32, atol=5e-2, rtol=5e-2), "mismatch vs f32 reference"

    print("KERNEL_OK")
</pallas_src>

<mosaic_0001>
module attributes {stable_mosaic.version = 11 : i64} {
  func.func @_mul_conv1x1_kernel(%arg0: i32, %arg1: i32, %arg2: memref<1x49x256xf32, #tpu.memory_space<vmem>>, %arg3: memref<1x1x256xf32, #tpu.memory_space<vmem>>, %arg4: memref<128x256xbf16, #tpu.memory_space<vmem>>, %arg5: memref<1x49x128xf32, #tpu.memory_space<vmem>>) attributes {dimension_semantics = [#tpu.dimension_semantics<parallel>, #tpu.dimension_semantics<parallel>], iteration_bounds = array<i64: 2, 1>, scalar_prefetch = 0 : i64, scratch_operands = 0 : i64, tpu.core_type = #tpu.core_type<tc>, window_params = [{transform_indices = @transform_0, window_bounds = array<i64: 1, 49, 256>}, {transform_indices = @transform_1, window_bounds = array<i64: 1, 1, 256>}, {transform_indices = @transform_2, window_bounds = array<i64: 128, 256>}, {transform_indices = @transform_3, window_bounds = array<i64: 1, 49, 128>}]} {
    %c0 = arith.constant 0 : index
    %c0_0 = arith.constant 0 : index
    %c0_1 = arith.constant 0 : index
    %0 = vector.load %arg2[%c0, %c0_0, %c0_1] : memref<1x49x256xf32, #tpu.memory_space<vmem>>, vector<1x49x256xf32>
    %1 = vector.shape_cast %0 : vector<1x49x256xf32> to vector<49x256xf32>
    %c0_2 = arith.constant 0 : index
    %c0_3 = arith.constant 0 : index
    %c0_4 = arith.constant 0 : index
    %2 = vector.load %arg3[%c0_2, %c0_3, %c0_4] : memref<1x1x256xf32, #tpu.memory_space<vmem>>, vector<1x1x256xf32>
    %3 = vector.shape_cast %2 : vector<1x1x256xf32> to vector<1x256xf32>
    %4 = vector.broadcast %3 : vector<1x256xf32> to vector<49x256xf32>
    %5 = arith.mulf %1, %4 : vector<49x256xf32>
    %6 = arith.truncf %5 : vector<49x256xf32> to vector<49x256xbf16>
    %c0_5 = arith.constant 0 : index
    %c0_6 = arith.constant 0 : index
    %7 = vector.load %arg4[%c0_5, %c0_6] : memref<128x256xbf16, #tpu.memory_space<vmem>>, vector<128x256xbf16>
    %cst = arith.constant dense<0.000000e+00> : vector<49x128xf32>
    %8 = tpu.matmul %6, %7, %cst {dimension_numbers = #tpu.dot_dimension_numbers<[1], [1], [0], [0], [0, 0, 1, 0], [], []>} : vector<49x256xbf16>, vector<128x256xbf16>, vector<49x128xf32> -> vector<49x128xf32>
    %c0_7 = arith.constant 0 : index
    %c0_8 = arith.constant 0 : index
    %c0_9 = arith.constant 0 : index
    %9 = vector.load %arg5[%c0_7, %c0_8, %c0_9] : memref<1x49x128xf32, #tpu.memory_space<vmem>>, vector<1x49x128xf32>
    %10 = vector.shape_cast %9 : vector<1x49x128xf32> to vector<49x128xf32>
    %11 = vector.shape_cast %8 : vector<49x128xf32> to vector<1x49x128xf32>
    tpu.vector_store %arg5[%c0_7, %c0_8, %c0_9], %11 {strides = array<i32>} : memref<1x49x128xf32, #tpu.memory_space<vmem>>, vector<1x49x128xf32>,
    return
  }
  func.func @transform_0(%arg0: i32, %arg1: i32) -> (i32, i32, i32) {
    %c0_i32 = arith.constant 0 : i32
    %c0_i32_0 = arith.constant 0 : i32
    %c0_i32_1 = arith.constant 0 : i32
    return %arg0, %c0_i32, %c0_i32_0 : i32, i32, i32
  }
  func.func @transform_1(%arg0: i32, %arg1: i32) -> (i32, i32, i32) {
    %c0_i32 = arith.constant 0 : i32
    %c0_i32_0 = arith.constant 0 : i32
    %c0_i32_1 = arith.constant 0 : i32
    return %arg0, %c0_i32, %c0_i32_0 : i32, i32, i32
  }
  func.func @transform_2(%arg0: i32, %arg1: i32) -> (i32, i32) {
    %c0_i32 = arith.constant 0 : i32
    %c0_i32_0 = arith.constant 0 : i32
    return %arg1, %c0_i32 : i32, i32
  }
  func.func @transform_3(%arg0: i32, %arg1: i32) -> (i32, i32, i32) {
    %c0_i32 = arith.constant 0 : i32
    %c0_i32_0 = arith.constant 0 : i32
    return %arg0, %c0_i32, %arg1 : i32, i32, i32
  }
}

</mosaic_0001>

<llo_original>
// kernel: tpu_custom_call.1
$region0: #{tpu_custom_call.1}
  #allocation0 [shape = 'u32[]', space=smem, size = 0x4, offset = 0x4, fixed_abs, tag = 'smem constant byte address 0x4 - core index']
  #allocation1 [shape = 'u32[144,128]{1,0:T(1,128)}', space=vmem, size = 0x12000, scoped, tag = 'internal scratch']
  %s0 = inlined_call_operand.vmem [shape: f32[2,49,256], index: 0, kind: input, shape index: {}]
  %s1 = inlined_call_operand.vmem [shape: f32[2,1,256], index: 1, kind: input, shape index: {}]
  %s2 = inlined_call_operand.vmem [shape: bf16[128,256], index: 2, kind: input, shape index: {}]
  %s3 = inlined_call_operand.vmem [shape: f32[2,49,128], index: 3, kind: output, shape index: {}]
  %s4 = sld [smem:[#allocation0]]
  $region45: #{tpu_custom_call.1} parent=0
    _
  %s6 = ssub.s32 1, %s4
  %s7 = scalar_select 0, %s6, %s4
  loop: start=0, step=1, limit=4
  $region2: #{tpu_custom_call.1} parent=0 // loop_pre_header
    _
  $region3: #{tpu_custom_call.1} parent=0 // loop_header
    %s9 = sphi 0, %s13
    %p10 = scmp.ge.s32.totalorder %s9, 4
    %s16 = sphi 0, %s28
    %s17 = sphi 0, %s24
    %s18 = sphi 0, %s16
    %s19 = sphi 0, %s17
    %s20 = sphi 0, %s18
    %s21 = sphi 0, %s19
    %s31 = sphi 0, %s33
    %s34 = sphi 0, %s31
    %s35 = sphi 0, %s34
    %s51 = sphi 0, %s35
    %s57 = sphi 0, %s59
    %s60 = sphi 0, %s57
    %s61 = sphi 0, %s60
    %s77 = sphi 0, %s61
    %s83 = sphi 0, %s85
    %s86 = sphi 0, %s83
    %s87 = sphi 0, %s86
    %s103 = sphi 0, %s87
    %s111 = sphi 0, %s113
    %s114 = sphi 0, %s111
    %s115 = sphi 0, %s114
    %s131 = sphi 0, %s115
  $region4: #{tpu_custom_call.1} parent=0 // loop_header_branch
    %12 = sbr.rel (%p10) target = $region8
  $region5: #{tpu_custom_call.1} parent=0 // loop_body
    %s14 = ssub.s32 %s9, 1
    %s15 = ssub.s32 %s9, 2
    %s22 = sadd.s32 1, %s17
    %p23 = scmp.ge.s32.totalorder %s22, 1
    %s24 = scalar_select %p23, 0, %s22
    %s25 = sadd.s32 1, %s16
    %s26 = scalar_select %p23, %s25, %s16
    %p27 = scmp.ge.s32.totalorder %s26, 2
    %s28 = scalar_select %p27, 0, %s26
    %s29 = ssub.s32 %s16, %s28
    %p30 = scmp.eq.s32.totalorder %s29, 0
    %s32 = sadd.s32 %s31, 1
    %s33 = scalar_select %p30, %s31, %s32
    %p36 = pneg %p30
    %p37 = scmp.eq.s32.totalorder %s9, 1
    %p38 = por %p36, %p37
    %p39 = scmp.ne.s32.totalorder %s31, %s34
    %p40 = scmp.eq.s32.totalorder %s9, 0
    %p41 = por %p39, %p40
    %p42 = scmp.ne.s32.totalorder %s31, %s34
    %p43 = scmp.eq.s32.totalorder %s14, 1
    %p44 = por %p42, %p43
    %p45 = scmp.ne.s32.totalorder %s34, %s35
    %p46 = scmp.eq.s32.totalorder %s14, 0
    %p47 = por %p45, %p46
    %p48 = scmp.ne.s32.totalorder %s34, %s35
    %p49 = scmp.eq.s32.totalorder %s15, 1
    %p50 = por %p48, %p49
    %p52 = scmp.ne.s32.totalorder %s35, %s51
    %p53 = scmp.eq.s32.totalorder %s15, 0
    %p54 = por %p52, %p53
    %s55 = ssub.s32 %s16, %s28
    %p56 = scmp.eq.s32.totalorder %s55, 0
    %s58 = sadd.s32 %s57, 1
    %s59 = scalar_select %p56, %s57, %s58
    %p62 = pneg %p56
    %p63 = scmp.eq.s32.totalorder %s9, 1
    %p64 = por %p62, %p63
    %p65 = scmp.ne.s32.totalorder %s57, %s60
    %p66 = scmp.eq.s32.totalorder %s9, 0
    %p67 = por %p65, %p66
    %p68 = scmp.ne.s32.totalorder %s57, %s60
    %p69 = scmp.eq.s32.totalorder %s14, 1
    %p70 = por %p68, %p69
    %p71 = scmp.ne.s32.totalorder %s60, %s61
    %p72 = scmp.eq.s32.totalorder %s14, 0
    %p73 = por %p71, %p72
    %p74 = scmp.ne.s32.totalorder %s60, %s61
    %p75 = scmp.eq.s32.totalorder %s15, 1
    %p76 = por %p74, %p75
    %p78 = scmp.ne.s32.totalorder %s61, %s77
    %p79 = scmp.eq.s32.totalorder %s15, 0
    %p80 = por %p78, %p79
    %s81 = ssub.s32 %s17, %s24
    %p82 = scmp.eq.s32.totalorder %s81, 0
    %s84 = sadd.s32 %s83, 1
    %s85 = scalar_select %p82, %s83, %s84
    %p88 = pneg %p82
    %p89 = scmp.eq.s32.totalorder %s9, 1
    %p90 = por %p88, %p89
    %p91 = scmp.ne.s32.totalorder %s83, %s86
    %p92 = scmp.eq.s32.totalorder %s9, 0
    %p93 = por %p91, %p92
    %p94 = scmp.ne.s32.totalorder %s83, %s86
    %p95 = scmp.eq.s32.totalorder %s14, 1
    %p96 = por %p94, %p95
    %p97 = scmp.ne.s32.totalorder %s86, %s87
    %p98 = scmp.eq.s32.totalorder %s14, 0
    %p99 = por %p97, %p98
    %p100 = scmp.ne.s32.totalorder %s86, %s87
    %p101 = scmp.eq.s32.totalorder %s15, 1
    %p102 = por %p100, %p101
    %p104 = scmp.ne.s32.totalorder %s87, %s103
    %p105 = scmp.eq.s32.totalorder %s15, 0
    %p106 = por %p104, %p105
    %s107 = ssub.s32 %s16, %s28
    %s108 = ssub.s32 %s17, %s24
    %s109 = sor.u32 %s107, %s108
    %p110 = scmp.eq.s32.totalorder %s109, 0
    %s112 = sadd.s32 %s111, 1
    %s113 = scalar_select %p110, %s111, %s112
    %p116 = pneg %p110
    %p117 = scmp.eq.s32.totalorder %s9, 1
    %p118 = por %p116, %p117
    %p119 = scmp.ne.s32.totalorder %s111, %s114
    %p120 = scmp.eq.s32.totalorder %s9, 0
    %p121 = por %p119, %p120
    %p122 = scmp.ne.s32.totalorder %s111, %s114
    %p123 = scmp.eq.s32.totalorder %s14, 1
    %p124 = por %p122, %p123
    %p125 = scmp.ne.s32.totalorder %s114, %s115
    %p126 = scmp.eq.s32.totalorder %s14, 0
    %p127 = por %p125, %p126
    %p128 = scmp.ne.s32.totalorder %s114, %s115
    %p129 = scmp.eq.s32.totalorder %s15, 1
    %p130 = por %p128, %p129
    %p132 = scmp.ne.s32.totalorder %s115, %s131
    %p133 = scmp.eq.s32.totalorder %s15, 0
    %p134 = por %p132, %p133
    %p135 = scmp.le.s32.totalorder 1, %s9
    %p136 = scmp.lt.s32.totalorder %s9, 3
    %p137 = pnand %p135, %p136
    %p138 = pneg %p137
    // Predicated region
    $region9: #{tpu_custom_call.1} parent=5 // pred_check
      _
    $region10: #{tpu_custom_call.1} parent=5 // pred_check_branch
      %140 = sbr.rel (%p137) target = $region12
    $region11: #{tpu_custom_call.1} parent=5 // pred_region
      %s141 = ssub.s32 %s9, 1
      // Predicated region
      $region13: #{tpu_custom_call.1} parent=11 // pred_check
        %p142 = pneg %p99
      $region14: #{tpu_custom_call.1} parent=11 // pred_check_branch
        %144 = sbr.rel (%p142) target = $region16
      $region15: #{tpu_custom_call.1} parent=11 // pred_region
        %s145 = smul.u32 16, %s19
        %p146 = scmp.lt.s32.totalorder %s145, 15
        %s147 = scalar_select %p146, %s145, 15
        %s148 = smul.addr %s147, 2
        %s149 = smul.addr %s148, 4
        %s150 = scalar_lea.vmem %s2, %s149
        %s151 = smul.u32 16, %s19
      $region16: #{tpu_custom_call.1} parent=11 // pred_fallthru
        _
    $region12: #{tpu_custom_call.1} parent=5 // pred_fallthru
      _
    %p152 = scmp.lt.s32.totalorder %s9, 2
    // Predicated region
    $region17: #{tpu_custom_call.1} parent=5 // pred_check
      %p153 = pneg %p152
    $region18: #{tpu_custom_call.1} parent=5 // pred_check_branch
      %155 = sbr.rel (%p153) target = $region20
    $region19: #{tpu_custom_call.1} parent=5 // pred_region
      // Predicated region
      $region21: #{tpu_custom_call.1} parent=19 // pred_check
        %p156 = pneg %p41
      $region22: #{tpu_custom_call.1} parent=19 // pred_check_branch
        %158 = sbr.rel (%p156) target = $region24
      $region23: #{tpu_custom_call.1} parent=19 // pred_region
        %p159 = scmp.lt.s32.totalorder %s16, 1
        %s160 = scalar_select %p159, %s16, 1
        %s161 = smul.addr %s160, 14
        %s162 = smul.addr %s161, 8
        %s163 = scalar_lea.vmem %s0, %s162
      $region24: #{tpu_custom_call.1} parent=19 // pred_fallthru
        _
      // Predicated region
      $region25: #{tpu_custom_call.1} parent=19 // pred_check
        %p164 = pneg %p67
      $region26: #{tpu_custom_call.1} parent=19 // pred_check_branch
        %166 = sbr.rel (%p164) target = $region28
      $region27: #{tpu_custom_call.1} parent=19 // pred_region
        %p167 = scmp.lt.s32.totalorder %s16, 1
        %s168 = scalar_select %p167, %s16, 1
        %s169 = smul.addr %s168, 2
        %s170 = scalar_lea.vmem %s1, %s169
      $region28: #{tpu_custom_call.1} parent=19 // pred_fallthru
        _
    $region20: #{tpu_custom_call.1} parent=5 // pred_fallthru
      _
    %p171 = scmp.le.s32.totalorder 1, %s9
    %p172 = scmp.lt.s32.totalorder %s9, 3
    %p173 = pnand %p171, %p172
    %p174 = pneg %p173
    // Predicated region
    $region29: #{tpu_custom_call.1} parent=5 // pred_check
      _
    $region30: #{tpu_custom_call.1} parent=5 // pred_check_branch
      %176 = sbr.rel (%p173) target = $region32
    $region31: #{tpu_custom_call.1} parent=5 // pred_region
      %s177 = ssub.s32 %s9, 1
      %p178 = scmp.lt.s32.totalorder %s18, 1
      %s179 = scalar_select %p178, %s18, 1
      %s180 = smul.addr %s179, 14
      %s181 = smul.addr %s180, 8
      %s182 = scalar_lea.vmem %s0, %s181
      %p183 = pneg %p47
      %p184 = pneg %p44
      %p185 = scmp.lt.s32.totalorder %s18, 1
      %s186 = scalar_select %p185, %s18, 1
      %s187 = smul.addr %s186, 2
      %s188 = scalar_lea.vmem %s1, %s187
      %p189 = pneg %p73
      %p190 = pneg %p70
      %s191 = smul.u32 16, %s19
      %p192 = scmp.lt.s32.totalorder %s191, 15
      %s193 = scalar_select %p192, %s191, 15
      %s194 = smul.addr %s193, 2
      %s195 = smul.addr %s194, 4
      %s196 = scalar_lea.vmem %s2, %s195
      %p197 = pneg %p99
      %p198 = pneg %p96
      %p199 = pneg %p127
      %p200 = pneg %p124
      %p201 = scmp.lt.s32.totalorder %s18, 1
      %s202 = scalar_select %p201, %s18, 1
      %p203 = scmp.lt.s32.totalorder %s19, 0
      %s204 = scalar_select %p203, %s19, 0
      %s205 = smul.addr %s202, 7
      %s206 = sadd.s32 %s204, %s205
      %s207 = smul.addr %s206, 8
      %s208 = scalar_lea.vmem %s3, %s207
      %p209 = scmp.lt.s32.totalorder %s18, 1
      %s210 = scalar_select %p209, %s18, 1
      %s211 = smul.addr %s210, 14
      %s212 = smul.addr %s211, 8
      %s213 = scalar_lea.vmem %s0, %s212
      %p214 = scmp.lt.s32.totalorder %s18, 1
      %s215 = scalar_select %p214, %s18, 1
      %s216 = smul.addr %s215, 2
      %s217 = scalar_lea.vmem %s1, %s216
      %s218 = smul.u32 16, %s19
      %p219 = scmp.lt.s32.totalorder %s218, 15
      %s220 = scalar_select %p219, %s218, 15
      %s221 = smul.addr %s220, 2
      %s222 = smul.addr %s221, 4
      %s223 = scalar_lea.vmem %s2, %s222
      %s224 = smul.u32 16, %s19
      %p225 = scmp.lt.s32.totalorder %s18, 1
      %s226 = scalar_select %p225, %s18, 1
      %p227 = scmp.lt.s32.totalorder %s19, 0
      %s228 = scalar_select %p227, %s19, 0
      %s229 = smul.addr %s226, 7
      %s230 = sadd.s32 %s228, %s229
      %s231 = smul.addr %s230, 8
      %s232 = scalar_lea.vmem %s3, %s231
      %v234 = vld [vmem:[%s213] sm:$0xff]
      %v235 = vld [vmem:[%s213 + $0x8] sm:$0xff]
      %v236 = vld [vmem:[%s213 + $0x10] sm:$0xff]
      %v237 = vld [vmem:[%s213 + $0x18] sm:$0xff]
      %v238 = vld [vmem:[%s213 + $0x20] sm:$0xff]
      %v239 = vld [vmem:[%s213 + $0x28] sm:$0xff]
      %v240 = vld [vmem:[%s213 + $0x30] sm:$0xff]
      %v241 = vld [vmem:[%s213 + $0x38] sm:$0xff]
      %v242 = vld [vmem:[%s213 + $0x40] sm:$0xff]
      %v243 = vld [vmem:[%s213 + $0x48] sm:$0xff]
      %v244 = vld [vmem:[%s213 + $0x50] sm:$0xff]
      %v245 = vld [vmem:[%s213 + $0x58] sm:$0xff]
      %v246 = vld [vmem:[%s213 + $0x60] sm:$0x1]
      %v247 = vld [vmem:[%s213 + $0x68] sm:$0x1]
      %v248 = vld [vmem:[%s217] sm:$0x3]
      %v250 = vlaneseq
      %v251 = vshrl.u32 %v250, 7
      %v252 = vsub.s32 0, %v251
      %v253 = vrot.slane %v248, %v252
      %v254 = vlaneseq
      %v255 = vshrl.u32 %v254, 7
      %v256 = vsub.s32 1, %v255
      %v257 = vrot.slane %v248, %v256
      %v260 = vmul.f32 %v234, %v253
      %v261 = vmul.f32 %v235, %v257
      %v262 = vmul.f32 %v236, %v253
      %v263 = vmul.f32 %v237, %v257
      %v264 = vmul.f32 %v238, %v253
      %v265 = vmul.f32 %v239, %v257
      %v266 = vmul.f32 %v240, %v253
      %v267 = vmul.f32 %v241, %v257
      %v268 = vmul.f32 %v242, %v253
      %v269 = vmul.f32 %v243, %v257
      %v270 = vmul.f32 %v244, %v253
      %v271 = vmul.f32 %v245, %v257
      %v272 = vmul.f32 %v246, %v253
      %v273 = vmul.f32 %v247, %v257
      %v274 = vpack.c.bf16 %v262, %v260
      %v275 = vpack.c.bf16 %v263, %v261
      %v276 = vpack.c.bf16 %v266, %v264
      %v277 = vpack.c.bf16 %v267, %v265
      %v278 = vpack.c.bf16 %v270, %v268
      %v279 = vpack.c.bf16 %v271, %v269
      %v280 = vpack.c.bf16 %v272, %v272
      %v281 = vpack.c.bf16 %v273, %v273
      %v282 = vld [vmem:[%s223] sm:$0xff]
      %v283 = vld [vmem:[%s223 + $0x8] sm:$0xff]
      %v284 = vld [vmem:[%s223 + $0x10] sm:$0xff]
      %v285 = vld [vmem:[%s223 + $0x18] sm:$0xff]
      %v286 = vld [vmem:[%s223 + $0x20] sm:$0xff]
      %v287 = vld [vmem:[%s223 + $0x28] sm:$0xff]
      %v288 = vld [vmem:[%s223 + $0x30] sm:$0xff]
      %v289 = vld [vmem:[%s223 + $0x38] sm:$0xff]
      %v290 = vld [vmem:[%s223 + $0x40] sm:$0xff]
      %v291 = vld [vmem:[%s223 + $0x48] sm:$0xff]
      %v292 = vld [vmem:[%s223 + $0x50] sm:$0xff]
      %v293 = vld [vmem:[%s223 + $0x58] sm:$0xff]
      %v294 = vld [vmem:[%s223 + $0x60] sm:$0xff]
      %v295 = vld [vmem:[%s223 + $0x68] sm:$0xff]
      %v296 = vld [vmem:[%s223 + $0x70] sm:$0xff]
      %v297 = vld [vmem:[%s223 + $0x78] sm:$0xff]
      %v314 = vunpack.c.l.b16 %v282
      %v315 = vunpack.c.h.b16 %v282
      %v316 = vunpack.c.l.b16 %v283
      %v317 = vunpack.c.h.b16 %v283
      %v318 = vunpack.c.l.b16 %v284
      %v319 = vunpack.c.h.b16 %v284
      %v320 = vunpack.c.l.b16 %v285
      %v321 = vunpack.c.h.b16 %v285
      %v322 = vunpack.c.l.b16 %v286
      %v323 = vunpack.c.h.b16 %v286
      %v324 = vunpack.c.l.b16 %v287
      %v325 = vunpack.c.h.b16 %v287
      %v326 = vunpack.c.l.b16 %v288
      %v327 = vunpack.c.h.b16 %v288
      %v328 = vunpack.c.l.b16 %v289
      %v329 = vunpack.c.h.b16 %v289
      %v330 = vunpack.c.l.b16 %v290
      %v331 = vunpack.c.h.b16 %v290
      %v332 = vunpack.c.l.b16 %v291
      %v333 = vunpack.c.h.b16 %v291
      %v334 = vunpack.c.l.b16 %v292
      %v335 = vunpack.c.h.b16 %v292
      %v336 = vunpack.c.l.b16 %v293
      %v337 = vunpack.c.h.b16 %v293
      %v338 = vunpack.c.l.b16 %v294
      %v339 = vunpack.c.h.b16 %v294
      %v340 = vunpack.c.l.b16 %v295
      %v341 = vunpack.c.h.b16 %v295
      %v342 = vunpack.c.l.b16 %v296
      %v343 = vunpack.c.h.b16 %v296
      %v344 = vunpack.c.l.b16 %v297
      %v345 = vunpack.c.h.b16 %v297
      %v346 = vpack.c.b16 %v316, %v314
      %v347 = vpack.c.b16 %v317, %v315
      %v348 = vpack.c.b16 %v320, %v318
      %v349 = vpack.c.b16 %v321, %v319
      %v350 = vpack.c.b16 %v324, %v322
      %v351 = vpack.c.b16 %v325, %v323
      %v352 = vpack.c.b16 %v328, %v326
      %v353 = vpack.c.b16 %v329, %v327
      %v354 = vpack.c.b16 %v332, %v330
      %v355 = vpack.c.b16 %v333, %v331
      %v356 = vpack.c.b16 %v336, %v334
      %v357 = vpack.c.b16 %v337, %v335
      %v358 = vpack.c.b16 %v340, %v338
      %v359 = vpack.c.b16 %v341, %v339
      %v360 = vpack.c.b16 %v344, %v342
      %v361 = vpack.c.b16 %v345, %v343
      %378 = vmatprep.subr.bf16.mxu0 %v347
      %379 = vmatpush1.bf16.xpose.msra.mxu0 %v346
      %380 = vmatprep.subr.bf16.mxu0 %v349
      %381 = vmatpush1.bf16.xpose.msra.mxu0 %v348
      %382 = vmatprep.subr.bf16.mxu0 %v351
      %383 = vmatpush1.bf16.xpose.msra.mxu0 %v350
      %384 = vmatprep.subr.bf16.mxu0 %v353
      %385 = vmatpush1.bf16.xpose.msra.mxu0 %v352
      %386 = vmatprep.subr.bf16.mxu0 %v355
      %387 = vmatpush1.bf16.xpose.msra.mxu0 %v354
      %388 = vmatprep.subr.bf16.mxu0 %v357
      %389 = vmatpush1.bf16.xpose.msra.mxu0 %v356
      %390 = vmatprep.subr.bf16.mxu0 %v359
      %391 = vmatpush1.bf16.xpose.msra.mxu0 %v358
      %392 = vmatprep.subr.bf16.mxu0 %v361
      %393 = vmatpush1.bf16.xpose.msra.mxu0 %v360
      %394 = vmatprep.subr.bf16.mxu0 0
      %395 = vmatpush1.bf16.xpose.msra.mxu0 0
      %396 = vmatprep.subr.bf16.mxu0 0
      %397 = vmatpush1.bf16.xpose.msra.mxu0 0
      %398 = vmatprep.subr.bf16.mxu0 0
      %399 = vmatpush1.bf16.xpose.msra.mxu0 0
      %400 = vmatprep.subr.bf16.mxu0 0
      %401 = vmatpush1.bf16.xpose.msra.mxu0 0
      %402 = vmatprep.subr.bf16.mxu0 0
      %403 = vmatpush1.bf16.xpose.msra.mxu0 0
      %404 = vmatprep.subr.bf16.mxu0 0
      %405 = vmatpush1.bf16.xpose.msra.mxu0 0
      %406 = vmatprep.subr.bf16.mxu0 0
      %407 = vmatpush1.bf16.xpose.msra.mxu0 0
      %408 = vmatprep.subr.bf16.mxu0 0
      %409 = vmatpush1.bf16.xpose.msra.mxu0 0
      %410 = vmatprep.mubr.bf16.mxu0 %v275
      %411 = vmatmul.mubr.bf16.gmra.mrb[0].mxu0 %v274
      %v412 = vpop.f32.mrb[0].mxu0
      %v413 = vadd.f32 0.0, %v412
      %v414 = vpop.f32.mrb[0].mxu0
      %v415 = vpop.f32.mrb[0].mxu0
      %v416 = vadd.f32 0.0, %v415
      %v417 = vpop.f32.mrb[0].mxu0
      %418 = vmatprep.mubr.bf16.mxu0 %v277
      %419 = vmatmul.mubr.bf16.gmra.mrb[0].mxu0 %v276
      %v420 = vpop.f32.mrb[0].mxu0
      %v421 = vadd.f32 0.0, %v420
      %v422 = vpop.f32.mrb[0].mxu0
      %v423 = vpop.f32.mrb[0].mxu0
      %v424 = vadd.f32 0.0, %v423
      %v425 = vpop.f32.mrb[0].mxu0
      %426 = vmatprep.mubr.bf16.mxu0 %v279
      %427 = vmatmul.mubr.bf16.gmra.mrb[0].mxu0 %v278
      %v428 = vpop.f32.mrb[0].mxu0
      %v429 = vadd.f32 0.0, %v428
      %v430 = vpop.f32.mrb[0].mxu0
      %v431 = vpop.f32.mrb[0].mxu0
      %v432 = vadd.f32 0.0, %v431
      %v433 = vpop.f32.mrb[0].mxu0
      %434 = vmatprep.mubr.bf16.mxu0 %v281
      %435 = vmatmul.mubr.bf16.gmra.mrb[0].mxu0 %v280
      %v436 = vpop.f32.mrb[0].mxu0
      %v437 = vadd.f32 0.0, %v436
      %v438 = vpop.f32.mrb[0].mxu0
      %v439 = vpop.f32.mrb[0].mxu0
      %v440 = vpop.f32.mrb[0].mxu0
      %441 = vdwg.mxu0
      %442 = vst [vmem:[%s232] sm:$0xff] %v413
      %443 = vst [vmem:[%s232 + $0x8] sm:$0xff] %v416
      %444 = vst [vmem:[%s232 + $0x10] sm:$0xff] %v421
      %445 = vst [vmem:[%s232 + $0x18] sm:$0xff] %v424
      %446 = vst [vmem:[%s232 + $0x20] sm:$0xff] %v429
      %447 = vst [vmem:[%s232 + $0x28] sm:$0xff] %v432
      %448 = vst [vmem:[%s232 + $0x30] sm:$0x1] %v437
      %p449 = scmp.lt.s32.totalorder %s18, 1
      %s450 = scalar_select %p449, %s18, 1
      %p451 = scmp.lt.s32.totalorder %s19, 0
      %s452 = scalar_select %p451, %s19, 0
      %s453 = smul.addr %s450, 7
      %s454 = sadd.s32 %s452, %s453
      %s455 = smul.addr %s454, 8
      %s456 = scalar_lea.vmem %s3, %s455
      // Predicated region
      $region33: #{tpu_custom_call.1} parent=31 // pred_check
        %p457 = pneg %p124
      $region34: #{tpu_custom_call.1} parent=31 // pred_check_branch
        %459 = sbr.rel (%p457) target = $region36
      $region35: #{tpu_custom_call.1} parent=31 // pred_region
        _
      $region36: #{tpu_custom_call.1} parent=31 // pred_fallthru
        _
    $region32: #{tpu_custom_call.1} parent=5 // pred_fallthru
      _
    %p460 = scmp.le.s32.totalorder 2, %s9
    // Predicated region
    $region37: #{tpu_custom_call.1} parent=5 // pred_check
      %p461 = pneg %p460
    $region38: #{tpu_custom_call.1} parent=5 // pred_check_branch
      %463 = sbr.rel (%p461) target = $region40
    $region39: #{tpu_custom_call.1} parent=5 // pred_region
      %s464 = ssub.s32 %s9, 2
      // Predicated region
      $region41: #{tpu_custom_call.1} parent=39 // pred_check
        %p465 = pneg %p130
      $region42: #{tpu_custom_call.1} parent=39 // pred_check_branch
        %467 = sbr.rel (%p465) target = $region44
      $region43: #{tpu_custom_call.1} parent=39 // pred_region
        %p468 = scmp.lt.s32.totalorder %s20, 1
        %s469 = scalar_select %p468, %s20, 1
        %p470 = scmp.lt.s32.totalorder %s21, 0
        %s471 = scalar_select %p470, %s21, 0
        %s472 = smul.addr %s469, 7
        %s473 = sadd.s32 %s471, %s472
        %s474 = smul.addr %s473, 8
        %s475 = scalar_lea.vmem %s3, %s474
      $region44: #{tpu_custom_call.1} parent=39 // pred_fallthru
        _
    $region40: #{tpu_custom_call.1} parent=5 // pred_fallthru
      _
  $region6: #{tpu_custom_call.1} parent=0 // loop_footer
    %s13 = sadd.s32 1, %s9
  $region7: #{tpu_custom_call.1} parent=0 // loop_footer_branch
    %8 = sbr.rel target = $region3
  $region8: #{tpu_custom_call.1} parent=0 // loop_exit
    _

</llo_original>
